<compile_context>
chip_gen: v7x
topology: tpu7x:2x2x1
jax: 0.10.0
libtpu: 0.0.40
codegen_flags: <defaults>
</compile_context>

<pallas_src>
import functools

import jax
import jax.numpy as jnp
from jax.experimental import pallas as pl
from jax.experimental.pallas import tpu as pltpu

_LANE = 128


# ---------------------------------------------------------------------------
# Small helpers
# ---------------------------------------------------------------------------
def _round_up(v, m):
    return ((v + m - 1) // m) * m


def _pad2d(x, rows, cols, fill=0.0):
    r, c = x.shape
    if r == rows and c == cols:
        return x
    return jnp.pad(x, ((0, rows - r), (0, cols - c)), constant_values=fill)


def _vmem_cap_bytes():
    """Generation-aware VMEM ceiling (128 MiB v5e/v6e, 64 MiB v7x), ~10% headroom."""
    try:
        return int(pltpu.get_tpu_info().vmem_capacity_bytes * 0.9)
    except Exception:
        return 64 << 20


def _choose_tiles(n):
    """Pick (padded_N, tm, tk) for the aggregation kernel.

    * tiny graphs (<=512 padded rows): a single block -> grid (1, 1).
    * larger graphs: tm row tiles of 512/256/128 (keeps >=2 parallel row tiles
      so both v7x TensorCores get work), and tk as large as cleanly divides the
      padded node count (full width when <=4096) to amortize per-step overhead.
    """
    n128 = _round_up(n, _LANE)
    if n128 <= 512:
        return n128, n128, n128
    if n128 % 512 == 0:
        tm = 512
    elif n128 % 256 == 0:
        tm = 256
    else:
        tm = 128
    tk = tm
    for cand in (4096, 2048, 1024, 512, 256):
        if n128 % cand == 0:
            tk = max(tk, cand)
            break
    if n128 <= 4096:
        tk = n128  # full-width reduction comfortably fits VMEM
    return n128, tm, tk


def _agg_vmem_bytes(tm, tk, fout_p, out_itemsize):
    """Resident footprint of the aggregation kernel (double-buffered I/O + scratch)."""
    a_bytes = 2 * tm * tk * 2                 # A_hat tile, bf16, double-buffered
    z_bytes = 2 * tk * fout_p * 2             # Z tile, bf16
    vec_bytes = 2 * 3 * 8 * fout_p * 4        # bias / scale / shift (8-sublane pad)
    out_bytes = 2 * tm * fout_p * out_itemsize
    acc_bytes = tm * fout_p * 4
    need = a_bytes + z_bytes + vec_bytes + out_bytes + acc_bytes
    return int(min(need + (2 << 20), _vmem_cap_bytes()))


# ---------------------------------------------------------------------------
# Kernel 1: feature transform   Z = H @ W    (row-tiled, full reduction)
# ---------------------------------------------------------------------------
def _feat_transform_kernel(h_ref, w_ref, z_ref):
    z_ref[...] = jnp.dot(h_ref[...], w_ref[...],
                         preferred_element_type=jnp.float32).astype(z_ref.dtype)


def _feat_transform(h_pad, w_pad, *, tz):
    np_, fin_p = h_pad.shape
    fout_p = w_pad.shape[1]
    return pl.pallas_call(
        _feat_transform_kernel,
        out_shape=jax.ShapeDtypeStruct((np_, fout_p), jnp.bfloat16),
        grid_spec=pltpu.PrefetchScalarGridSpec(
            num_scalar_prefetch=0,
            grid=(np_ // tz,),
            in_specs=[
                pl.BlockSpec((tz, fin_p), lambda i: (i, 0)),        # H row tile
                pl.BlockSpec((fin_p, fout_p), lambda i: (0, 0)),    # W (resident)
            ],
            out_specs=pl.BlockSpec((tz, fout_p), lambda i: (i, 0)),
        ),
        compiler_params=pltpu.CompilerParams(
            dimension_semantics=("parallel",)),
    )(h_pad, w_pad)


# ---------------------------------------------------------------------------
# Kernel 2: aggregation   Y[i] = sum_k A[i,k] @ Z[k] + b ; epilogue
# grid = (N/tm  [parallel row tiles],  N/tk  [arbitrary reduction tiles])
# ---------------------------------------------------------------------------
def _aggregate_bn_kernel(a_ref, z_ref, b_ref, s_ref, t_ref, out_ref, acc_ref):
    k = pl.program_id(1)

    @pl.when(k == 0)
    def _():
        acc_ref[...] = jnp.zeros_like(acc_ref)

    acc_ref[...] += jnp.dot(a_ref[...], z_ref[...],
                            preferred_element_type=jnp.float32)

    @pl.when(k == pl.num_programs(1) - 1)
    def _():
        # bias + ReLU + eval-mode BatchNorm (scale/shift); dropout = identity.
        y = acc_ref[...] + b_ref[...]
        y = jnp.maximum(y, 0.0) * s_ref[...] + t_ref[...]
        out_ref[...] = y.astype(out_ref.dtype)


def _aggregate_logsoftmax_kernel(a_ref, z_ref, b_ref, out_ref, acc_ref,
                                 *, valid_out):
    k = pl.program_id(1)

    @pl.when(k == 0)
    def _():
        acc_ref[...] = jnp.zeros_like(acc_ref)

    acc_ref[...] += jnp.dot(a_ref[...], z_ref[...],
                            preferred_element_type=jnp.float32)

    @pl.when(k == pl.num_programs(1) - 1)
    def _():
        y = acc_ref[...] + b_ref[...]
        # log_softmax over classes; mask lane-padded class columns.
        lane = jax.lax.broadcasted_iota(jnp.int32, y.shape, 1)
        y = jnp.where(lane < valid_out, y, jnp.float32(-1e30))
        m = jnp.max(y, axis=1, keepdims=True)
        zc = y - m
        lse = jnp.log(jnp.sum(jnp.exp(zc), axis=1, keepdims=True))
        out_ref[...] = (zc - lse).astype(out_ref.dtype)


def _aggregate(a_pad, z_pad, b_pad, s_pad, t_pad, *, tm, tk,
               final_layer, valid_out, out_dtype):
    np_ = a_pad.shape[0]
    fout_p = z_pad.shape[1]
    grid = (np_ // tm, np_ // tk)

    a_spec = pl.BlockSpec((tm, tk), lambda i, k: (i, k))
    z_spec = pl.BlockSpec((tk, fout_p), lambda i, k: (k, 0))
    vec_spec = pl.BlockSpec((1, fout_p), lambda i, k: (0, 0))
    out_spec = pl.BlockSpec((tm, fout_p), lambda i, k: (i, 0))

    if final_layer:
        kernel = functools.partial(_aggregate_logsoftmax_kernel,
                                   valid_out=valid_out)
        in_specs = [a_spec, z_spec, vec_spec]
        operands = (a_pad, z_pad, b_pad)
    else:
        kernel = _aggregate_bn_kernel
        in_specs = [a_spec, z_spec, vec_spec, vec_spec, vec_spec]
        operands = (a_pad, z_pad, b_pad, s_pad, t_pad)

    return pl.pallas_call(
        kernel,
        out_shape=jax.ShapeDtypeStruct((np_, fout_p), out_dtype),
        grid_spec=pltpu.PrefetchScalarGridSpec(
            num_scalar_prefetch=0,
            grid=grid,
            in_specs=in_specs,
            out_specs=out_spec,
            scratch_shapes=[pltpu.VMEM((tm, fout_p), jnp.float32)],
        ),
        compiler_params=pltpu.CompilerParams(
            dimension_semantics=("parallel", "arbitrary"),
            vmem_limit_bytes=_agg_vmem_bytes(
                tm, tk, fout_p, jnp.dtype(out_dtype).itemsize),
        ),
    )(*operands)


# ---------------------------------------------------------------------------
# Wrapper: padding / bf16 casting / per-layer calls
# ---------------------------------------------------------------------------
def gcn_forward(a_hat, x, params):
    """3-layer GCN forward; per layer: feature transform kernel + aggregation kernel."""
    n, fin = x.shape
    hid = params["w1"].shape[1]
    ncls = params["w3"].shape[1]

    np_, tm, tk = _choose_tiles(n)
    fin_p = _round_up(fin, _LANE)
    hid_p = _round_up(hid, _LANE)
    cls_p = _round_up(ncls, _LANE)

    # bf16 operands for the MXU; biases / BN params stay f32.
    a_pad = _pad2d(a_hat, np_, np_).astype(jnp.bfloat16)
    x_pad = _pad2d(x, np_, fin_p).astype(jnp.bfloat16)

    w1 = _pad2d(params["w1"], fin_p, hid_p).astype(jnp.bfloat16)
    w2 = _pad2d(params["w2"], hid_p, hid_p).astype(jnp.bfloat16)
    w3 = _pad2d(params["w3"], hid_p, cls_p).astype(jnp.bfloat16)
    b1 = _pad2d(params["b1"], 1, hid_p).astype(jnp.float32)
    b2 = _pad2d(params["b2"], 1, hid_p).astype(jnp.float32)
    b3 = _pad2d(params["b3"], 1, cls_p).astype(jnp.float32)
    s1 = _pad2d(params["bn1_scale"], 1, hid_p, fill=1.0).astype(jnp.float32)
    t1 = _pad2d(params["bn1_shift"], 1, hid_p).astype(jnp.float32)
    s2 = _pad2d(params["bn2_scale"], 1, hid_p, fill=1.0).astype(jnp.float32)
    t2 = _pad2d(params["bn2_shift"], 1, hid_p).astype(jnp.float32)

    # Layer 1
    z1 = _feat_transform(x_pad, w1, tz=tm)
    h1 = _aggregate(a_pad, z1, b1, s1, t1, tm=tm, tk=tk,
                    final_layer=False, valid_out=hid, out_dtype=jnp.bfloat16)
    # Layer 2
    z2 = _feat_transform(h1, w2, tz=tm)
    h2 = _aggregate(a_pad, z2, b2, s2, t2, tm=tm, tk=tk,
                    final_layer=False, valid_out=hid, out_dtype=jnp.bfloat16)
    # Layer 3 (log_softmax epilogue, no BN inputs)
    z3 = _feat_transform(h2, w3, tz=tm)
    y = _aggregate(a_pad, z3, b3, None, None, tm=tm, tk=tk,
                   final_layer=True, valid_out=ncls, out_dtype=jnp.float32)
    return y[:n, :ncls]


# ---------------------------------------------------------------------------
# Glue: graph normalization, deterministic parameter init, references.
# ---------------------------------------------------------------------------
def build_normalized_adjacency(edge_index, num_nodes):
    """Dense D^{-1/2}(A + I)D^{-1/2} (GCNConv with add_self_loops=True)."""
    src, dst = edge_index
    adj = jnp.zeros((num_nodes, num_nodes), jnp.float32)
    adj = adj.at[src, dst].set(1.0)
    adj = adj + jnp.eye(num_nodes, dtype=jnp.float32)
    deg = jnp.sum(adj, axis=1)
    d_inv_sqrt = jax.lax.rsqrt(deg)
    return adj * d_inv_sqrt[:, None] * d_inv_sqrt[None, :]


def glorot(key, shape):
    fan_in, fan_out = shape
    limit = jnp.sqrt(6.0 / (fan_in + fan_out))
    return jax.random.uniform(key, shape, jnp.float32, -limit, limit)


def init_params(key, input_dim, hidden_dim, output_dim, eps=1e-5):
    ks = jax.random.split(key, 9)

    # Eval-mode BatchNorm1d folded into per-channel scale/shift:
    #   y = (x - running_mean) / sqrt(running_var + eps) * gamma + beta
    def bn_fold(gamma, beta, mean, var):
        scale = gamma * jax.lax.rsqrt(var + eps)
        shift = beta - mean * scale
        return scale.reshape(1, -1), shift.reshape(1, -1)

    g1 = 1.0 + 0.1 * jax.random.normal(ks[3], (hidden_dim,))
    be1 = 0.1 * jax.random.normal(ks[4], (hidden_dim,))
    m1 = 0.05 * jax.random.normal(ks[5], (hidden_dim,))
    v1 = 1.0 + 0.1 * jax.random.uniform(ks[5], (hidden_dim,))
    g2 = 1.0 + 0.1 * jax.random.normal(ks[6], (hidden_dim,))
    be2 = 0.1 * jax.random.normal(ks[7], (hidden_dim,))
    m2 = 0.05 * jax.random.normal(ks[8], (hidden_dim,))
    v2 = 1.0 + 0.1 * jax.random.uniform(ks[8], (hidden_dim,))

    s1, t1 = bn_fold(g1, be1, m1, v1)
    s2, t2 = bn_fold(g2, be2, m2, v2)

    return {
        "w1": glorot(ks[0], (input_dim, hidden_dim)),
        "b1": jnp.zeros((1, hidden_dim), jnp.float32),
        "bn1_scale": s1, "bn1_shift": t1,
        "w2": glorot(ks[1], (hidden_dim, hidden_dim)),
        "b2": jnp.zeros((1, hidden_dim), jnp.float32),
        "bn2_scale": s2, "bn2_shift": t2,
        "w3": glorot(ks[2], (hidden_dim, output_dim)),
        "b3": jnp.zeros((1, output_dim), jnp.float32),
    }


def gcn_reference(a_hat, x, p, dtype=jnp.float32):
    """Plain-JAX reference; dtype=bfloat16 mirrors the kernel's numerics."""
    cast = lambda v: v.astype(dtype)
    ab = cast(a_hat)

    def layer(h, w, b):
        z = jnp.dot(cast(h), cast(w), preferred_element_type=jnp.float32)
        return jnp.dot(ab, cast(z), preferred_element_type=jnp.float32) + b

    h = layer(x, p["w1"], p["b1"])
    h = jnp.maximum(h, 0.0) * p["bn1_scale"] + p["bn1_shift"]
    h = layer(h, p["w2"], p["b2"])
    h = jnp.maximum(h, 0.0) * p["bn2_scale"] + p["bn2_shift"]
    h = layer(h, p["w3"], p["b3"])
    return jax.nn.log_softmax(h, axis=1)


if __name__ == "__main__":
    # Small synthetic graph: 64 nodes, 16 input features, hidden 32, 4 classes.
    num_nodes, input_dim, hidden_dim, output_dim = 64, 16, 32, 4

    key = jax.random.PRNGKey(0)
    k_feat, k_edge, k_param = jax.random.split(key, 3)

    # Node features [N, Fin]
    x = jax.random.normal(k_feat, (num_nodes, input_dim), jnp.float32)

    # Random undirected edges (each edge stored in both directions).
    num_edges = 128
    src = jax.random.randint(k_edge, (num_edges,), 0, num_nodes)
    dst = jax.random.randint(jax.random.fold_in(k_edge, 1), (num_edges,), 0, num_nodes)
    edge_index = jnp.stack(
        [jnp.concatenate([src, dst]), jnp.concatenate([dst, src])], axis=0
    )

    a_hat = build_normalized_adjacency(edge_index, num_nodes)
    params = init_params(k_param, input_dim, hidden_dim, output_dim)

    out = gcn_forward(a_hat, x, params)
    out = jax.block_until_ready(out)
    assert out.shape == (num_nodes, output_dim)

    # Tight check vs a reference that mirrors the kernel's bf16/f32 mixed math.
    ref_bf16 = gcn_reference(a_hat, x, params, jnp.bfloat16)
    assert jnp.allclose(out, ref_bf16, atol=1e-2, rtol=1e-2), "mismatch vs bf16 reference"

    # Loose check vs the pure-f32 reference (bf16 operand rounding only).
    ref_f32 = gcn_reference(a_hat, x, params, jnp.float32)
    assert jnp.allclose(out, ref_f32, atol=5e-2, rtol=5e-2), "mismatch vs f32 reference"

    print("KERNEL_OK")
</pallas_src>

<mosaic_0001>
module attributes {stable_mosaic.version = 11 : i64} {
  func.func @_feat_transform_kernel(%arg0: i32, %arg1: memref<128x128xbf16, #tpu.memory_space<vmem>>, %arg2: memref<128x128xbf16, #tpu.memory_space<vmem>>, %arg3: memref<128x128xbf16, #tpu.memory_space<vmem>>) attributes {dimension_semantics = [#tpu.dimension_semantics<parallel>], iteration_bounds = array<i64: 1>, scalar_prefetch = 0 : i64, scratch_operands = 0 : i64, tpu.core_type = #tpu.core_type<tc>, window_params = [{transform_indices = @transform_0, window_bounds = array<i64: 128, 128>}, {pipeline_mode = #tpu.pipeline_mode<synchronous>, transform_indices = @transform_1, window_bounds = array<i64: 128, 128>}, {transform_indices = @transform_2, window_bounds = array<i64: 128, 128>}]} {
    %c0 = arith.constant 0 : index
    %c0_0 = arith.constant 0 : index
    %0 = vector.load %arg1[%c0, %c0_0] : memref<128x128xbf16, #tpu.memory_space<vmem>>, vector<128x128xbf16>
    %c0_1 = arith.constant 0 : index
    %c0_2 = arith.constant 0 : index
    %1 = vector.load %arg2[%c0_1, %c0_2] : memref<128x128xbf16, #tpu.memory_space<vmem>>, vector<128x128xbf16>
    %cst = arith.constant dense<0.000000e+00> : vector<128x128xf32>
    %2 = tpu.matmul %0, %1, %cst {dimension_numbers = #tpu.dot_dimension_numbers<[1], [0], [0], [1], [0, 0, 1, 1], [], []>} : vector<128x128xbf16>, vector<128x128xbf16>, vector<128x128xf32> -> vector<128x128xf32>
    %3 = arith.truncf %2 : vector<128x128xf32> to vector<128x128xbf16>
    %c0_3 = arith.constant 0 : index
    %c0_4 = arith.constant 0 : index
    %4 = vector.load %arg3[%c0_3, %c0_4] : memref<128x128xbf16, #tpu.memory_space<vmem>>, vector<128x128xbf16>
    tpu.vector_store %arg3[%c0_3, %c0_4], %3 {strides = array<i32>} : memref<128x128xbf16, #tpu.memory_space<vmem>>, vector<128x128xbf16>,
    return
  }
  func.func @transform_0(%arg0: i32) -> (i32, i32) {
    %c0_i32 = arith.constant 0 : i32
    %c0_i32_0 = arith.constant 0 : i32
    return %arg0, %c0_i32 : i32, i32
  }
  func.func @transform_1(%arg0: i32) -> (i32, i32) {
    %c0_i32 = arith.constant 0 : i32
    %c0_i32_0 = arith.constant 0 : i32
    %c0_i32_1 = arith.constant 0 : i32
    return %c0_i32, %c0_i32_0 : i32, i32
  }
  func.func @transform_2(%arg0: i32) -> (i32, i32) {
    %c0_i32 = arith.constant 0 : i32
    %c0_i32_0 = arith.constant 0 : i32
    return %arg0, %c0_i32 : i32, i32
  }
}

</mosaic_0001>

<llo_original>
// kernel: tpu_custom_call.1
$region0: #{tpu_custom_call.1}
  #allocation0 [shape = 'u32[]', space=smem, size = 0x4, offset = 0x4, fixed_abs, tag = 'smem constant byte address 0x4 - core index']
  #allocation1 [shape = 'u32[144,128]{1,0:T(1,128)}', space=vmem, size = 0x12000, scoped, tag = 'internal scratch']
  %s0 = inlined_call_operand.hbm [shape: bf16[128,128], index: 0, kind: input, shape index: {}]
  %s1 = inlined_call_operand.hbm [shape: bf16[128,128], index: 1, kind: input, shape index: {}]
  %s2 = inlined_call_operand.hbm [shape: bf16[128,128], index: 2, kind: output, shape index: {}]
  %s3 = sld [smem:[#allocation0]]
  $region26: #{tpu_custom_call.1} parent=0
    _
  %s5 = ssub.s32 1, %s3
  %s6 = scalar_select 0, %s5, %s3
  $region1: #{tpu_custom_call.1} parent=0
    #allocation2 [shape = 'u8[32768]{0}', space=vmem, size = 0x8000, scoped, tag = 'input window, operand 0, single buffered']
    #allocation3 [shape = 's32[1]{0}', space=sflag, size = 0x4, scoped, tag = 'scoped memory for tpu_custom_call.1']
    #allocation4 [shape = 's32[1]{0}', space=sflag, size = 0x4, scoped, tag = 'scoped memory for tpu_custom_call.1']
    #allocation5 [shape = 'u8[32768]{0}', space=vmem, size = 0x8000, scoped, tag = 'input window, operand 1, single buffered']
    #allocation6 [shape = 's32[1]{0}', space=sflag, size = 0x4, scoped, tag = 'scoped memory for tpu_custom_call.1']
    #allocation7 [shape = 'u8[32768]{0}', space=vmem, size = 0x8000, scoped, tag = 'output window, operand 0, single buffered']
    %7 = vsyncpa [#allocation3], 0
    %8 = vsyncpa [#allocation6], 0
    %9 = vsyncpa [#allocation4], 0
    // Predicated region
    $region2: #{tpu_custom_call.1} parent=1 // pred_check
      _
    $region3: #{tpu_custom_call.1} parent=1 // pred_check_branch
      %11 = sbr.rel (0) target = $region5
    $region4: #{tpu_custom_call.1} parent=1 // pred_region
      %s13 = ssub.s32 1024, 1024
      %14 = vsyncadd [#allocation3], %s13
      %s15 = sshll.u32 [#allocation2], 4
      %s16 = int_to_ptr.vmem [resolvable:$true] %s15
      %21 = dma.hbm_to_vmem [thread:$0]  %s0, 1024, %s16, [#allocation3], 64, 64, 4
    $region5: #{tpu_custom_call.1} parent=1 // pred_fallthru
      _
    // Predicated region
    $region6: #{tpu_custom_call.1} parent=1 // pred_check
      _
    $region7: #{tpu_custom_call.1} parent=1 // pred_check_branch
      %23 = sbr.rel (0) target = $region9
    $region8: #{tpu_custom_call.1} parent=1 // pred_region
      %s25 = ssub.s32 1024, 1024
      %26 = vsyncadd [#allocation6], %s25
      %s27 = sshll.u32 [#allocation5], 4
      %s28 = int_to_ptr.vmem [resolvable:$true] %s27
      %33 = dma.hbm_to_vmem [thread:$0]  %s1, 1024, %s28, [#allocation6], 64, 64, 4
    $region9: #{tpu_custom_call.1} parent=1 // pred_fallthru
      _
    // Predicated region
    $region10: #{tpu_custom_call.1} parent=1 // pred_check
      _
    $region11: #{tpu_custom_call.1} parent=1 // pred_check_branch
      %35 = sbr.rel (0) target = $region13
    $region12: #{tpu_custom_call.1} parent=1 // pred_region
      %36 = dma.done [#allocation3], 1024
    $region13: #{tpu_custom_call.1} parent=1 // pred_fallthru
      _
    // Predicated region
    $region14: #{tpu_custom_call.1} parent=1 // pred_check
      _
    $region15: #{tpu_custom_call.1} parent=1 // pred_check_branch
      %38 = sbr.rel (0) target = $region17
    $region16: #{tpu_custom_call.1} parent=1 // pred_region
      %39 = dma.done [#allocation6], 1024
    $region17: #{tpu_custom_call.1} parent=1 // pred_fallthru
      _
    %v41 = vld [vmem:[#allocation2] sm:$0xf]
    %v42 = vld [vmem:[#allocation2 + $0x4] sm:$0xf]
    %v43 = vld [vmem:[#allocation2 + $0x8] sm:$0xf]
    %v44 = vld [vmem:[#allocation2 + $0xc] sm:$0xf]
    %v45 = vld [vmem:[#allocation2 + $0x10] sm:$0xf]
    %v46 = vld [vmem:[#allocation2 + $0x14] sm:$0xf]
    %v47 = vld [vmem:[#allocation2 + $0x18] sm:$0xf]
    %v48 = vld [vmem:[#allocation2 + $0x1c] sm:$0xf]
    %v49 = vld [vmem:[#allocation2 + $0x20] sm:$0xf]
    %v50 = vld [vmem:[#allocation2 + $0x24] sm:$0xf]
    %v51 = vld [vmem:[#allocation2 + $0x28] sm:$0xf]
    %v52 = vld [vmem:[#allocation2 + $0x2c] sm:$0xf]
    %v53 = vld [vmem:[#allocation2 + $0x30] sm:$0xf]
    %v54 = vld [vmem:[#allocation2 + $0x34] sm:$0xf]
    %v55 = vld [vmem:[#allocation2 + $0x38] sm:$0xf]
    %v56 = vld [vmem:[#allocation2 + $0x3c] sm:$0xf]
    %v57 = vld [vmem:[#allocation5] sm:$0xf]
    %v58 = vld [vmem:[#allocation5 + $0x4] sm:$0xf]
    %v59 = vld [vmem:[#allocation5 + $0x8] sm:$0xf]
    %v60 = vld [vmem:[#allocation5 + $0xc] sm:$0xf]
    %v61 = vld [vmem:[#allocation5 + $0x10] sm:$0xf]
    %v62 = vld [vmem:[#allocation5 + $0x14] sm:$0xf]
    %v63 = vld [vmem:[#allocation5 + $0x18] sm:$0xf]
    %v64 = vld [vmem:[#allocation5 + $0x1c] sm:$0xf]
    %v65 = vld [vmem:[#allocation5 + $0x20] sm:$0xf]
    %v66 = vld [vmem:[#allocation5 + $0x24] sm:$0xf]
    %v67 = vld [vmem:[#allocation5 + $0x28] sm:$0xf]
    %v68 = vld [vmem:[#allocation5 + $0x2c] sm:$0xf]
    %v69 = vld [vmem:[#allocation5 + $0x30] sm:$0xf]
    %v70 = vld [vmem:[#allocation5 + $0x34] sm:$0xf]
    %v71 = vld [vmem:[#allocation5 + $0x38] sm:$0xf]
    %v72 = vld [vmem:[#allocation5 + $0x3c] sm:$0xf]
    %v89 = vunpack.c.l.b16 %v41
    %v90 = vunpack.c.l.b16 %v42
    %v91 = vunpack.c.l.b16 %v43
    %v92 = vunpack.c.l.b16 %v44
    %v93 = vunpack.c.l.b16 %v45
    %v94 = vunpack.c.l.b16 %v46
    %v95 = vunpack.c.l.b16 %v47
    %v96 = vunpack.c.l.b16 %v48
    %v97 = vunpack.c.l.b16 %v49
    %v98 = vunpack.c.l.b16 %v50
    %v99 = vunpack.c.l.b16 %v51
    %v100 = vunpack.c.l.b16 %v52
    %v101 = vunpack.c.l.b16 %v53
    %v102 = vunpack.c.l.b16 %v54
    %v103 = vunpack.c.l.b16 %v55
    %v104 = vunpack.c.l.b16 %v56
    %v105 = vpack.c.b16 %v90, %v89
    %v106 = vpack.c.b16 %v92, %v91
    %v107 = vpack.c.b16 %v94, %v93
    %v108 = vpack.c.b16 %v96, %v95
    %v109 = vpack.c.b16 %v98, %v97
    %v110 = vpack.c.b16 %v100, %v99
    %v111 = vpack.c.b16 %v102, %v101
    %v112 = vpack.c.b16 %v104, %v103
    %v137 = vunpack.c.l.b16 %v57
    %v138 = vunpack.c.l.b16 %v58
    %v139 = vunpack.c.l.b16 %v59
    %v140 = vunpack.c.l.b16 %v60
    %v141 = vunpack.c.l.b16 %v61
    %v142 = vunpack.c.l.b16 %v62
    %v143 = vunpack.c.l.b16 %v63
    %v144 = vunpack.c.l.b16 %v64
    %v145 = vunpack.c.l.b16 %v65
    %v146 = vunpack.c.l.b16 %v66
    %v147 = vunpack.c.l.b16 %v67
    %v148 = vunpack.c.l.b16 %v68
    %v149 = vunpack.c.l.b16 %v69
    %v150 = vunpack.c.l.b16 %v70
    %v151 = vunpack.c.l.b16 %v71
    %v152 = vunpack.c.l.b16 %v72
    %v153 = vpack.c.b16 %v138, %v137
    %v154 = vpack.c.b16 %v140, %v139
    %v155 = vpack.c.b16 %v142, %v141
    %v156 = vpack.c.b16 %v144, %v143
    %v157 = vpack.c.b16 %v146, %v145
    %v158 = vpack.c.b16 %v148, %v147
    %v159 = vpack.c.b16 %v150, %v149
    %v160 = vpack.c.b16 %v152, %v151
    %169 = vmatprep.subr.bf16.mxu0 0
    %170 = vmatpush1.bf16.msra.mxu0 %v153
    %171 = vmatprep.subr.bf16.mxu0 0
    %172 = vmatpush1.bf16.msra.mxu0 %v154
    %173 = vmatprep.subr.bf16.mxu0 0
    %174 = vmatpush1.bf16.msra.mxu0 %v155
    %175 = vmatprep.subr.bf16.mxu0 0
    %176 = vmatpush1.bf16.msra.mxu0 %v156
    %177 = vmatprep.subr.bf16.mxu0 0
    %178 = vmatpush1.bf16.msra.mxu0 %v157
    %179 = vmatprep.subr.bf16.mxu0 0
    %180 = vmatpush1.bf16.msra.mxu0 %v158
    %181 = vmatprep.subr.bf16.mxu0 0
    %182 = vmatpush1.bf16.msra.mxu0 %v159
    %183 = vmatprep.subr.bf16.mxu0 0
    %184 = vmatpush1.bf16.msra.mxu0 %v160
    %185 = vmatprep.subr.bf16.mxu0 0
    %186 = vmatpush1.bf16.msra.mxu0 0
    %187 = vmatprep.subr.bf16.mxu0 0
    %188 = vmatpush1.bf16.msra.mxu0 0
    %189 = vmatprep.subr.bf16.mxu0 0
    %190 = vmatpush1.bf16.msra.mxu0 0
    %191 = vmatprep.subr.bf16.mxu0 0
    %192 = vmatpush1.bf16.msra.mxu0 0
    %193 = vmatprep.subr.bf16.mxu0 0
    %194 = vmatpush1.bf16.msra.mxu0 0
    %195 = vmatprep.subr.bf16.mxu0 0
    %196 = vmatpush1.bf16.msra.mxu0 0
    %197 = vmatprep.subr.bf16.mxu0 0
    %198 = vmatpush1.bf16.msra.mxu0 0
    %199 = vmatprep.subr.bf16.mxu0 0
    %200 = vmatpush1.bf16.msra.mxu0 0
    %201 = vmatprep.mubr.bf16.mxu0 0
    %202 = vmatmul.mubr.bf16.gmra.mrb[0].mxu0 %v105
    %v203 = vpop.f32.mrb[0].mxu0
    %v204 = vadd.f32 0.0, %v203
    %v205 = vpop.f32.mrb[0].mxu0
    %v206 = vpop.f32.mrb[0].mxu0
    %v207 = vadd.f32 0.0, %v206
    %v208 = vpop.f32.mrb[0].mxu0
    %209 = vmatprep.mubr.bf16.mxu0 0
    %210 = vmatmul.mubr.bf16.gmra.mrb[0].mxu0 %v106
    %v211 = vpop.f32.mrb[0].mxu0
    %v212 = vadd.f32 0.0, %v211
    %v213 = vpop.f32.mrb[0].mxu0
    %v214 = vpop.f32.mrb[0].mxu0
    %v215 = vadd.f32 0.0, %v214
    %v216 = vpop.f32.mrb[0].mxu0
    %217 = vmatprep.mubr.bf16.mxu0 0
    %218 = vmatmul.mubr.bf16.gmra.mrb[0].mxu0 %v107
    %v219 = vpop.f32.mrb[0].mxu0
    %v220 = vadd.f32 0.0, %v219
    %v221 = vpop.f32.mrb[0].mxu0
    %v222 = vpop.f32.mrb[0].mxu0
    %v223 = vadd.f32 0.0, %v222
    %v224 = vpop.f32.mrb[0].mxu0
    %225 = vmatprep.mubr.bf16.mxu0 0
    %226 = vmatmul.mubr.bf16.gmra.mrb[0].mxu0 %v108
    %v227 = vpop.f32.mrb[0].mxu0
    %v228 = vadd.f32 0.0, %v227
    %v229 = vpop.f32.mrb[0].mxu0
    %v230 = vpop.f32.mrb[0].mxu0
    %v231 = vadd.f32 0.0, %v230
    %v232 = vpop.f32.mrb[0].mxu0
    %233 = vmatprep.mubr.bf16.mxu0 0
    %234 = vmatmul.mubr.bf16.gmra.mrb[0].mxu0 %v109
    %v235 = vpop.f32.mrb[0].mxu0
    %v236 = vadd.f32 0.0, %v235
    %v237 = vpop.f32.mrb[0].mxu0
    %v238 = vpop.f32.mrb[0].mxu0
    %v239 = vadd.f32 0.0, %v238
    %v240 = vpop.f32.mrb[0].mxu0
    %241 = vmatprep.mubr.bf16.mxu0 0
    %242 = vmatmul.mubr.bf16.gmra.mrb[0].mxu0 %v110
    %v243 = vpop.f32.mrb[0].mxu0
    %v244 = vadd.f32 0.0, %v243
    %v245 = vpop.f32.mrb[0].mxu0
    %v246 = vpop.f32.mrb[0].mxu0
    %v247 = vadd.f32 0.0, %v246
    %v248 = vpop.f32.mrb[0].mxu0
    %249 = vmatprep.mubr.bf16.mxu0 0
    %250 = vmatmul.mubr.bf16.gmra.mrb[0].mxu0 %v111
    %v251 = vpop.f32.mrb[0].mxu0
    %v252 = vadd.f32 0.0, %v251
    %v253 = vpop.f32.mrb[0].mxu0
    %v254 = vpop.f32.mrb[0].mxu0
    %v255 = vadd.f32 0.0, %v254
    %v256 = vpop.f32.mrb[0].mxu0
    %257 = vmatprep.mubr.bf16.mxu0 0
    %258 = vmatmul.mubr.bf16.gmra.mrb[0].mxu0 %v112
    %v259 = vpop.f32.mrb[0].mxu0
    %v260 = vadd.f32 0.0, %v259
    %v261 = vpop.f32.mrb[0].mxu0
    %v262 = vpop.f32.mrb[0].mxu0
    %v263 = vadd.f32 0.0, %v262
    %v264 = vpop.f32.mrb[0].mxu0
    %265 = vdwg.mxu0
    %v266 = vpack.c.bf16 %v207, %v204
    %v267 = vpack.c.bf16 %v215, %v212
    %v268 = vpack.c.bf16 %v223, %v220
    %v269 = vpack.c.bf16 %v231, %v228
    %v270 = vpack.c.bf16 %v239, %v236
    %v271 = vpack.c.bf16 %v247, %v244
    %v272 = vpack.c.bf16 %v255, %v252
    %v273 = vpack.c.bf16 %v263, %v260
    %v282 = vunpack.c.l.b16 %v266
    %v283 = vunpack.c.h.b16 %v266
    %v284 = vunpack.c.l.b16 %v267
    %v285 = vunpack.c.h.b16 %v267
    %v286 = vunpack.c.l.b16 %v268
    %v287 = vunpack.c.h.b16 %v268
    %v288 = vunpack.c.l.b16 %v269
    %v289 = vunpack.c.h.b16 %v269
    %v290 = vunpack.c.l.b16 %v270
    %v291 = vunpack.c.h.b16 %v270
    %v292 = vunpack.c.l.b16 %v271
    %v293 = vunpack.c.h.b16 %v271
    %v294 = vunpack.c.l.b16 %v272
    %v295 = vunpack.c.h.b16 %v272
    %v296 = vunpack.c.l.b16 %v273
    %v297 = vunpack.c.h.b16 %v273
    %v298 = vpack.c.b16 %v282, %v282
    %v299 = vpack.c.b16 %v283, %v283
    %v300 = vpack.c.b16 %v284, %v284
    %v301 = vpack.c.b16 %v285, %v285
    %v302 = vpack.c.b16 %v286, %v286
    %v303 = vpack.c.b16 %v287, %v287
    %v304 = vpack.c.b16 %v288, %v288
    %v305 = vpack.c.b16 %v289, %v289
    %v306 = vpack.c.b16 %v290, %v290
    %v307 = vpack.c.b16 %v291, %v291
    %v308 = vpack.c.b16 %v292, %v292
    %v309 = vpack.c.b16 %v293, %v293
    %v310 = vpack.c.b16 %v294, %v294
    %v311 = vpack.c.b16 %v295, %v295
    %v312 = vpack.c.b16 %v296, %v296
    %v313 = vpack.c.b16 %v297, %v297
    %330 = vst [vmem:[#allocation7] sm:$0xf] %v298
    %331 = vst [vmem:[#allocation7 + $0x4] sm:$0xf] %v299
    %332 = vst [vmem:[#allocation7 + $0x8] sm:$0xf] %v300
    %333 = vst [vmem:[#allocation7 + $0xc] sm:$0xf] %v301
    %334 = vst [vmem:[#allocation7 + $0x10] sm:$0xf] %v302
    %335 = vst [vmem:[#allocation7 + $0x14] sm:$0xf] %v303
    %336 = vst [vmem:[#allocation7 + $0x18] sm:$0xf] %v304
    %337 = vst [vmem:[#allocation7 + $0x1c] sm:$0xf] %v305
    %338 = vst [vmem:[#allocation7 + $0x20] sm:$0xf] %v306
    %339 = vst [vmem:[#allocation7 + $0x24] sm:$0xf] %v307
    %340 = vst [vmem:[#allocation7 + $0x28] sm:$0xf] %v308
    %341 = vst [vmem:[#allocation7 + $0x2c] sm:$0xf] %v309
    %342 = vst [vmem:[#allocation7 + $0x30] sm:$0xf] %v310
    %343 = vst [vmem:[#allocation7 + $0x34] sm:$0xf] %v311
    %344 = vst [vmem:[#allocation7 + $0x38] sm:$0xf] %v312
    %345 = vst [vmem:[#allocation7 + $0x3c] sm:$0xf] %v313
    // Predicated region
    $region18: #{tpu_custom_call.1} parent=1 // pred_check
      _
    $region19: #{tpu_custom_call.1} parent=1 // pred_check_branch
      %347 = sbr.rel (0) target = $region21
    $region20: #{tpu_custom_call.1} parent=1 // pred_region
      %s349 = ssub.s32 1024, 1024
      %350 = vsyncadd [#allocation4], %s349
      %s351 = sshll.u32 [#allocation7], 4
      %s352 = int_to_ptr.vmem [resolvable:$true] %s351
      %357 = dma.vmem_to_hbm [thread:$0]  %s352, 1024, %s2, [#allocation4], 64, 64, 4
    $region21: #{tpu_custom_call.1} parent=1 // pred_fallthru
      _
    // Predicated region
    $region22: #{tpu_custom_call.1} parent=1 // pred_check
      _
    $region23: #{tpu_custom_call.1} parent=1 // pred_check_branch
      %359 = sbr.rel (0) target = $region25
    $region24: #{tpu_custom_call.1} parent=1 // pred_region
      %360 = dma.done [#allocation4], 1024
    $region25: #{tpu_custom_call.1} parent=1 // pred_fallthru
      _
    %361 = vsyncpa [#allocation3], 1
    %362 = vsyncpa [#allocation6], 1
    %363 = vsyncpa [#allocation4], 1

</llo_original>
